<compile_context>
chip_gen: v7x
topology: tpu7x:2x2x1
jax: 0.10.0
libtpu: 0.0.40
codegen_flags: <defaults>
</compile_context>

<pallas_src>
import jax
import jax.numpy as jnp
from jax.experimental import pallas as pl
from jax.experimental.pallas import tpu as pltpu

N0 = 128


def rayleigh_kernel(theta_ref, mat_ref, out_ref):
    t = theta_ref[...]                      # (1, N) f32, lane layout
    n = mat_ref.shape[0]

    # ||theta||^2 — independent reduction, overlaps with the quadratic-form chain.
    s = jnp.sum(t * t)

    # theta in column (sublane) layout, derived in-kernel so theta is only shipped
    # once as a dense row.  Transpose-free relayout: mask the sublane-broadcast of
    # the row to the diagonal and lane-reduce (iota / where / reduce are
    # unconditionally supported by Mosaic).
    row_ix = jax.lax.broadcasted_iota(jnp.int32, (n, n), 0)
    col_ix = jax.lax.broadcasted_iota(jnp.int32, (n, n), 1)
    t_col = jnp.sum(jnp.where(row_ix == col_ix, t, 0.0),
                    axis=1, keepdims=True)  # (N, 1): t_col[i, 0] = theta_i

    # Single fused reduce: q = sum_{i,j} M[i,j] * theta_i * theta_j  (== theta^T M theta
    # for any M).  Pure VPU multiplies + one XLU full reduce; no MXU round-trip.
    q = jnp.sum(mat_ref[...] * t_col * t)

    # Deferred normalization: loss = q / ||theta||^2 == vec^T M vec, vec = theta/||theta||.
    out_ref[0, 0] = q / s


@jax.jit
def dummy_min_eigen(theta, mat):
    """theta: (N,), mat: (N, N).  Returns the scalar Rayleigh quotient
    vec^T mat vec with vec = theta / ||theta|| (the module's forward())."""
    n = mat.shape[0]
    # Casts / reshape are inside the same jit as the pallas_call, so XLA fuses them
    # with the custom call's operands instead of dispatching separate tiny kernels.
    t_row = theta.astype(jnp.float32).reshape(1, n)
    mat32 = mat.astype(jnp.float32)

    out = pl.pallas_call(
        rayleigh_kernel,
        out_shape=jax.ShapeDtypeStruct((1, 1), jnp.float32),
        in_specs=[
            pl.BlockSpec(memory_space=pltpu.MemorySpace.VMEM),   # theta row (1, N), 512 B
            pl.BlockSpec(memory_space=pltpu.MemorySpace.VMEM),   # mat (N, N), 64 KiB resident
        ],
        out_specs=pl.BlockSpec(memory_space=pltpu.MemorySpace.SMEM),  # scalar result
        cost_estimate=pl.CostEstimate(
            flops=4 * n * n + 4 * n,
            transcendentals=0,
            bytes_accessed=n * n * 4 + n * 4 + 4,
        ),
    )(t_row, mat32)
    return out[0, 0]


if __name__ == "__main__":
    key = jax.random.PRNGKey(0)
    k_mat, k_theta = jax.random.split(key)

    # Deterministic parameter / buffer init matching the module's __init__.
    tmp0 = jax.random.normal(k_mat, (N0, N0), dtype=jnp.float32)
    mat = (tmp0 + tmp0.T) / 2.0                                   # symmetric matrix buffer
    theta = jax.random.normal(k_theta, (N0,), dtype=jnp.float32)  # Parameter

    loss = jax.block_until_ready(dummy_min_eigen(theta, mat))

    # Pure-JAX reference check.
    vec = theta / jnp.linalg.norm(theta)
    ref = jnp.vdot(vec, mat @ vec)
    assert jnp.allclose(loss, ref, rtol=1e-4, atol=1e-4), (loss, ref)

    print("KERNEL_OK")
</pallas_src>

<mosaic_0001>
module attributes {stable_mosaic.version = 11 : i64} {
  func.func @rayleigh_kernel(%arg0: memref<1x128xf32, #tpu.memory_space<vmem>>, %arg1: memref<128x128xf32, #tpu.memory_space<vmem>>, %arg2: memref<1x1xf32, #tpu.memory_space<smem>>) attributes {dimension_semantics = [], scalar_prefetch = 0 : i64, scratch_operands = 0 : i64, tpu.core_type = #tpu.core_type<tc>} {
    %c0 = arith.constant 0 : index
    %c0_0 = arith.constant 0 : index
    %0 = vector.load %arg0[%c0, %c0_0] : memref<1x128xf32, #tpu.memory_space<vmem>>, vector<1x128xf32>
    %1 = arith.mulf %0, %0 : vector<1x128xf32>
    %2 = vector.shape_cast %1 : vector<1x128xf32> to vector<1x1x128xf32>
    %cst = arith.constant dense<0.000000e+00> : vector<1xf32>
    %3 = vector.multi_reduction <add>, %2, %cst [1, 2] : vector<1x1x128xf32> to vector<1xf32>
    %4 = vector.shape_cast %3 : vector<1xf32> to vector<1x1x1xf32>
    %5 = vector.extract %4[0, 0, 0] : f32 from vector<1x1x1xf32>
    %6 = tpu.iota {dimensions = array<i32: 0>} : vector<128x128xi32>
    %7 = tpu.iota {dimensions = array<i32: 1>} : vector<128x128xi32>
    %8 = arith.cmpi eq, %6, %7 : vector<128x128xi32>
    %cst_1 = arith.constant 0.000000e+00 : f32
    %9 = vector.shape_cast %0 : vector<1x128xf32> to vector<1x128xf32>
    %10 = vector.broadcast %9 : vector<1x128xf32> to vector<128x128xf32>
    %11 = vector.broadcast %cst_1 : f32 to vector<128x128xf32>
    %12 = arith.select %8, %10, %11 : vector<128x128xi1>, vector<128x128xf32>
    %cst_2 = arith.constant dense<0.000000e+00> : vector<128xf32>
    %13 = vector.multi_reduction <add>, %12, %cst_2 [1] : vector<128x128xf32> to vector<128xf32>
    %14 = vector.shape_cast %13 : vector<128xf32> to vector<128x1xf32>
    %c0_3 = arith.constant 0 : index
    %c0_4 = arith.constant 0 : index
    %15 = vector.load %arg1[%c0_3, %c0_4] : memref<128x128xf32, #tpu.memory_space<vmem>>, vector<128x128xf32>
    %16 = vector.broadcast %14 : vector<128x1xf32> to vector<128x128xf32>
    %17 = arith.mulf %15, %16 : vector<128x128xf32>
    %18 = vector.broadcast %0 : vector<1x128xf32> to vector<128x128xf32>
    %19 = arith.mulf %17, %18 : vector<128x128xf32>
    %20 = vector.shape_cast %19 : vector<128x128xf32> to vector<1x128x128xf32>
    %cst_5 = arith.constant dense<0.000000e+00> : vector<1xf32>
    %21 = vector.multi_reduction <add>, %20, %cst_5 [1, 2] : vector<1x128x128xf32> to vector<1xf32>
    %22 = vector.shape_cast %21 : vector<1xf32> to vector<1x1x1xf32>
    %23 = vector.extract %22[0, 0, 0] : f32 from vector<1x1x1xf32>
    %24 = arith.divf %23, %5 : f32
    %c0_6 = arith.constant 0 : index
    %c0_7 = arith.constant 0 : index
    %25 = memref.load %arg2[%c0_6, %c0_7] : memref<1x1xf32, #tpu.memory_space<smem>>
    memref.store %24, %arg2[%c0_6, %c0_7] : memref<1x1xf32, #tpu.memory_space<smem>>
    return
  }
}

</mosaic_0001>

<llo_original>
// kernel: dummy_min_eigen.1
$region0: #{dummy_min_eigen.1}
  #allocation0 [shape = 'u32[]', space=smem, size = 0x4, offset = 0x4, fixed_abs, tag = 'smem constant byte address 0x4 - core index']
  #allocation1 [shape = 'u32[144,128]{1,0:T(1,128)}', space=vmem, size = 0x12000, scoped, tag = 'internal scratch']
  %s0 = inlined_call_operand.vmem [shape: f32[1,128], index: 0, kind: input, shape index: {}]
  %s1 = inlined_call_operand.hbm [shape: f32[128,128], index: 1, kind: input, shape index: {}]
  %s2 = inlined_call_operand.hbm [shape: f32[1,1], index: 2, kind: output, shape index: {}]
  %s3 = sld [smem:[#allocation0]]
  $region22: #{dummy_min_eigen.1} parent=0
    _
  %s5 = ssub.s32 1, %s3
  %s6 = scalar_select 0, %s5, %s3
  $region1: #{dummy_min_eigen.1} parent=0
    #allocation2 [shape = 'u8[65536]{0}', space=vmem, size = 0x10000, scoped, tag = 'input window, operand 1, single buffered']
    #allocation3 [shape = 's32[1]{0}', space=sflag, size = 0x4, scoped, tag = 'scoped memory for dummy_min_eigen.1']
    #allocation4 [shape = 's32[1]{0}', space=sflag, size = 0x4, scoped, tag = 'scoped memory for dummy_min_eigen.1']
    #allocation5 [shape = 'u8[512]{0}', space=smem, size = 0x200, scoped, tag = 'output window, operand 0, single buffered']
    %7 = vsyncpa [#allocation3], 0
    %8 = vsyncpa [#allocation4], 0
    // Predicated region
    $region2: #{dummy_min_eigen.1} parent=1 // pred_check
      _
    $region3: #{dummy_min_eigen.1} parent=1 // pred_check_branch
      %10 = sbr.rel (0) target = $region5
    $region4: #{dummy_min_eigen.1} parent=1 // pred_region
      _
    $region5: #{dummy_min_eigen.1} parent=1 // pred_fallthru
      _
    // Predicated region
    $region6: #{dummy_min_eigen.1} parent=1 // pred_check
      _
    $region7: #{dummy_min_eigen.1} parent=1 // pred_check_branch
      %12 = sbr.rel (0) target = $region9
    $region8: #{dummy_min_eigen.1} parent=1 // pred_region
      %s14 = ssub.s32 2048, 2048
      %15 = vsyncadd [#allocation3], %s14
      %s16 = sshll.u32 [#allocation2], 4
      %s17 = int_to_ptr.vmem [resolvable:$true] %s16
      %22 = dma.hbm_to_vmem [thread:$0]  %s1, 2048, %s17, [#allocation3], 128, 128, 8
    $region9: #{dummy_min_eigen.1} parent=1 // pred_fallthru
      _
    // Predicated region
    $region10: #{dummy_min_eigen.1} parent=1 // pred_check
      _
    $region11: #{dummy_min_eigen.1} parent=1 // pred_check_branch
      %24 = sbr.rel (0) target = $region13
    $region12: #{dummy_min_eigen.1} parent=1 // pred_region
      %25 = dma.done [#allocation3], 2048
    $region13: #{dummy_min_eigen.1} parent=1 // pred_fallthru
      _
    %v26 = vld [vmem:[%s0] sm:$0x1]
    %v27 = vmul.f32 %v26, %v26
    %vm28 = vcmask 1040384
    %v29 = vsel %vm28, %v27, 0.0
    %30 = vadd.xlane.f32.xlu0 %v29
    %v31 = vpop.xlane.xlu0 %30
    %v32 = vrot.slane %v31, 4
    %v33 = vadd.f32 %v31, %v32
    %v34 = vrot.slane %v33, 2
    %v35 = vadd.f32 %v33, %v34
    %v36 = vrot.slane %v35, 1
    %v37 = vadd.f32 %v35, %v36
    %s38 = vtos %v37
    %v39 = vlaneseq
    %v40 = vshrl.u32 %v39, 7
    %v41 = vadd.s32 %v40, 8
    %v42 = vadd.s32 %v40, 16
    %v43 = vadd.s32 %v40, 24
    %v44 = vadd.s32 %v40, 32
    %v45 = vadd.s32 %v40, 40
    %v46 = vadd.s32 %v40, 48
    %v47 = vadd.s32 %v40, 56
    %v48 = vadd.s32 %v40, 64
    %v49 = vadd.s32 %v40, 72
    %v50 = vadd.s32 %v40, 80
    %v51 = vadd.s32 %v40, 88
    %v52 = vadd.s32 %v40, 96
    %v53 = vadd.s32 %v40, 104
    %v54 = vadd.s32 %v40, 112
    %v55 = vadd.s32 %v40, 120
    %v56 = vlaneseq
    %v57 = vand.u32 %v56, 127
    %vm58 = vcmp.eq.s32.totalorder %v40, %v57
    %vm59 = vcmp.eq.s32.totalorder %v41, %v57
    %vm60 = vcmp.eq.s32.totalorder %v42, %v57
    %vm61 = vcmp.eq.s32.totalorder %v43, %v57
    %vm62 = vcmp.eq.s32.totalorder %v44, %v57
    %vm63 = vcmp.eq.s32.totalorder %v45, %v57
    %vm64 = vcmp.eq.s32.totalorder %v46, %v57
    %vm65 = vcmp.eq.s32.totalorder %v47, %v57
    %vm66 = vcmp.eq.s32.totalorder %v48, %v57
    %vm67 = vcmp.eq.s32.totalorder %v49, %v57
    %vm68 = vcmp.eq.s32.totalorder %v50, %v57
    %vm69 = vcmp.eq.s32.totalorder %v51, %v57
    %vm70 = vcmp.eq.s32.totalorder %v52, %v57
    %vm71 = vcmp.eq.s32.totalorder %v53, %v57
    %vm72 = vcmp.eq.s32.totalorder %v54, %v57
    %vm73 = vcmp.eq.s32.totalorder %v55, %v57
    %v75 = vlaneseq
    %v76 = vshrl.u32 %v75, 7
    %v77 = vsub.s32 0, %v76
    %v78 = vrot.slane %v26, %v77
    %v80 = vsel %vm58, %v78, 0.0
    %v81 = vsel %vm59, %v78, 0.0
    %v82 = vsel %vm60, %v78, 0.0
    %v83 = vsel %vm61, %v78, 0.0
    %v84 = vsel %vm62, %v78, 0.0
    %v85 = vsel %vm63, %v78, 0.0
    %v86 = vsel %vm64, %v78, 0.0
    %v87 = vsel %vm65, %v78, 0.0
    %v88 = vsel %vm66, %v78, 0.0
    %v89 = vsel %vm67, %v78, 0.0
    %v90 = vsel %vm68, %v78, 0.0
    %v91 = vsel %vm69, %v78, 0.0
    %v92 = vsel %vm70, %v78, 0.0
    %v93 = vsel %vm71, %v78, 0.0
    %v94 = vsel %vm72, %v78, 0.0
    %v95 = vsel %vm73, %v78, 0.0
    %96 = vadd.xlane.f32.xlu0 %v80
    %v97 = vpop.xlane.xlu0 %96
    %98 = vadd.xlane.f32.xlu0 %v81
    %v99 = vpop.xlane.xlu0 %98
    %100 = vadd.xlane.f32.xlu0 %v82
    %v101 = vpop.xlane.xlu0 %100
    %102 = vadd.xlane.f32.xlu0 %v83
    %v103 = vpop.xlane.xlu0 %102
    %104 = vadd.xlane.f32.xlu0 %v84
    %v105 = vpop.xlane.xlu0 %104
    %106 = vadd.xlane.f32.xlu0 %v85
    %v107 = vpop.xlane.xlu0 %106
    %108 = vadd.xlane.f32.xlu0 %v86
    %v109 = vpop.xlane.xlu0 %108
    %110 = vadd.xlane.f32.xlu0 %v87
    %v111 = vpop.xlane.xlu0 %110
    %112 = vadd.xlane.f32.xlu0 %v88
    %v113 = vpop.xlane.xlu0 %112
    %114 = vadd.xlane.f32.xlu0 %v89
    %v115 = vpop.xlane.xlu0 %114
    %116 = vadd.xlane.f32.xlu0 %v90
    %v117 = vpop.xlane.xlu0 %116
    %118 = vadd.xlane.f32.xlu0 %v91
    %v119 = vpop.xlane.xlu0 %118
    %120 = vadd.xlane.f32.xlu0 %v92
    %v121 = vpop.xlane.xlu0 %120
    %122 = vadd.xlane.f32.xlu0 %v93
    %v123 = vpop.xlane.xlu0 %122
    %124 = vadd.xlane.f32.xlu0 %v94
    %v125 = vpop.xlane.xlu0 %124
    %126 = vadd.xlane.f32.xlu0 %v95
    %v127 = vpop.xlane.xlu0 %126
    %v128 = vld [vmem:[#allocation2] sm:$0xff]
    %v129 = vld [vmem:[#allocation2 + $0x8] sm:$0xff]
    %v130 = vld [vmem:[#allocation2 + $0x10] sm:$0xff]
    %v131 = vld [vmem:[#allocation2 + $0x18] sm:$0xff]
    %v132 = vld [vmem:[#allocation2 + $0x20] sm:$0xff]
    %v133 = vld [vmem:[#allocation2 + $0x28] sm:$0xff]
    %v134 = vld [vmem:[#allocation2 + $0x30] sm:$0xff]
    %v135 = vld [vmem:[#allocation2 + $0x38] sm:$0xff]
    %v136 = vld [vmem:[#allocation2 + $0x40] sm:$0xff]
    %v137 = vld [vmem:[#allocation2 + $0x48] sm:$0xff]
    %v138 = vld [vmem:[#allocation2 + $0x50] sm:$0xff]
    %v139 = vld [vmem:[#allocation2 + $0x58] sm:$0xff]
    %v140 = vld [vmem:[#allocation2 + $0x60] sm:$0xff]
    %v141 = vld [vmem:[#allocation2 + $0x68] sm:$0xff]
    %v142 = vld [vmem:[#allocation2 + $0x70] sm:$0xff]
    %v143 = vld [vmem:[#allocation2 + $0x78] sm:$0xff]
    %v144 = vmul.f32 %v128, %v97
    %v145 = vmul.f32 %v129, %v99
    %v146 = vmul.f32 %v130, %v101
    %v147 = vmul.f32 %v131, %v103
    %v148 = vmul.f32 %v132, %v105
    %v149 = vmul.f32 %v133, %v107
    %v150 = vmul.f32 %v134, %v109
    %v151 = vmul.f32 %v135, %v111
    %v152 = vmul.f32 %v136, %v113
    %v153 = vmul.f32 %v137, %v115
    %v154 = vmul.f32 %v138, %v117
    %v155 = vmul.f32 %v139, %v119
    %v156 = vmul.f32 %v140, %v121
    %v157 = vmul.f32 %v141, %v123
    %v158 = vmul.f32 %v142, %v125
    %v159 = vmul.f32 %v143, %v127
    %v160 = vmul.f32 %v144, %v78
    %v161 = vmul.f32 %v145, %v78
    %v162 = vmul.f32 %v146, %v78
    %v163 = vmul.f32 %v147, %v78
    %v164 = vmul.f32 %v148, %v78
    %v165 = vmul.f32 %v149, %v78
    %v166 = vmul.f32 %v150, %v78
    %v167 = vmul.f32 %v151, %v78
    %v168 = vmul.f32 %v152, %v78
    %v169 = vmul.f32 %v153, %v78
    %v170 = vmul.f32 %v154, %v78
    %v171 = vmul.f32 %v155, %v78
    %v172 = vmul.f32 %v156, %v78
    %v173 = vmul.f32 %v157, %v78
    %v174 = vmul.f32 %v158, %v78
    %v175 = vmul.f32 %v159, %v78
    %v176 = vadd.f32 %v160, %v161
    %v177 = vadd.f32 %v176, %v162
    %v178 = vadd.f32 %v177, %v163
    %v179 = vadd.f32 %v178, %v164
    %v180 = vadd.f32 %v179, %v165
    %v181 = vadd.f32 %v180, %v166
    %v182 = vadd.f32 %v181, %v167
    %v183 = vadd.f32 %v182, %v168
    %v184 = vadd.f32 %v183, %v169
    %v185 = vadd.f32 %v184, %v170
    %v186 = vadd.f32 %v185, %v171
    %v187 = vadd.f32 %v186, %v172
    %v188 = vadd.f32 %v187, %v173
    %v189 = vadd.f32 %v188, %v174
    %v190 = vadd.f32 %v189, %v175
    %191 = vadd.xlane.f32.xlu0 %v190
    %v192 = vpop.xlane.xlu0 %191
    %v193 = vrot.slane %v192, 4
    %v194 = vadd.f32 %v192, %v193
    %v195 = vrot.slane %v194, 2
    %v196 = vadd.f32 %v194, %v195
    %v197 = vrot.slane %v196, 1
    %v198 = vadd.f32 %v196, %v197
    %s199 = vtos %v198
    %v200 = vstv %s38
    %v201 = vrcp.pop %v200
    %s202 = vtos %v201
    %s203 = smul.f32 %s199, %s202
    %s204 = scalar_lea.smem [#allocation5], 0
    %205 = sst [smem:[%s204]] %s203
    // Predicated region
    $region14: #{dummy_min_eigen.1} parent=1 // pred_check
      _
    $region15: #{dummy_min_eigen.1} parent=1 // pred_check_branch
      %207 = sbr.rel (0) target = $region17
    $region16: #{dummy_min_eigen.1} parent=1 // pred_region
      %s209 = ssub.s32 16, 16
      %210 = vsyncadd [#allocation4], %s209
      %213 = dma.smem_to_hbm [#allocation5], 16, %s2, [#allocation4]
    $region17: #{dummy_min_eigen.1} parent=1 // pred_fallthru
      _
    // Predicated region
    $region18: #{dummy_min_eigen.1} parent=1 // pred_check
      _
    $region19: #{dummy_min_eigen.1} parent=1 // pred_check_branch
      %215 = sbr.rel (0) target = $region21
    $region20: #{dummy_min_eigen.1} parent=1 // pred_region
      %216 = dma.done [#allocation4], 16
    $region21: #{dummy_min_eigen.1} parent=1 // pred_fallthru
      _
    %217 = sfence
    %218 = vsyncpa [#allocation3], 1
    %219 = vsyncpa [#allocation4], 1

</llo_original>
